<compile_context>
chip_gen: v5e
topology: v5e:2x2
jax: 0.10.0
libtpu: 0.0.40
codegen_flags: <defaults>
</compile_context>

<pallas_src>
from functools import partial

import jax
import jax.numpy as jnp
from jax import lax
from jax.experimental import pallas as pl
from jax.experimental.pallas import tpu as pltpu


# ----------------------------------------------------------------------------
# Wrapper-side layout transforms (single cheap passes; no im2col expansion)
# ----------------------------------------------------------------------------
def _space_to_depth(x_nchw, dtype):
    """NCHW -> zero-padded (p=1) space-to-depth tensor [N, Ho+1, Wo+1, 4*C]."""
    N, C, H, W = x_nchw.shape
    assert H % 2 == 0 and W % 2 == 0, "H, W must be divisible by size_divisibility=2"
    xp = jnp.pad(x_nchw, ((0, 0), (0, 0), (1, 1), (1, 1)))       # [N, C, H+2, W+2]
    Hz, Wz = (H + 2) // 2, (W + 2) // 2
    xp = xp.reshape(N, C, Hz, 2, Wz, 2)                          # (n, c, hz, dh, wz, dw)
    z = jnp.transpose(xp, (0, 2, 4, 3, 5, 1))                    # (n, hz, wz, dh, dw, c)
    return z.reshape(N, Hz, Wz, 4 * C).astype(dtype)


def _fold_weight(w_oihw, dtype):
    """OIHW 3x3 weights -> merged-tap matrix [Cout, 16*Cin].

    Flat K index = (2a+b)*(4*Cin) + dh*2*Cin + dw*Cin + c, matching the order
    in which the kernel concatenates the four tap slices of z.
    """
    Cout, Cin, KH, KW = w_oihw.shape
    assert KH == 3 and KW == 3
    wp = jnp.pad(w_oihw, ((0, 0), (0, 0), (0, 1), (0, 1)))       # kh,kw: 3 -> 4 (zeros)
    wp = wp.reshape(Cout, Cin, 2, 2, 2, 2)                       # (co, c, a, dh, b, dw)
    wf = jnp.transpose(wp, (0, 2, 4, 3, 5, 1))                   # (co, a, b, dh, dw, c)
    return wf.reshape(Cout, 16 * Cin).astype(dtype)


def _choose_row_tile(ho, wo, cout, out_tile_bytes):
    """Pick row tile th so the per-step output tile is ~out_tile_bytes.

    Constraint: the output block's last dim (th*Wo) must be a multiple of 128
    lanes, or th must cover the whole (padded) image so the block equals the
    full dim.  Returns (th, num_row_tiles, padded_Ho).
    """
    th_max = max(1, out_tile_bytes // (wo * cout * 4))
    if th_max >= ho:
        return ho, 1, ho
    for th in range(min(th_max, ho), 0, -1):
        if (th * wo) % 128 == 0:
            rt = -(-ho // th)
            return th, rt, rt * th
    # TODO(synk): for awkward Wo with huge Ho this falls back to one step per
    # image; a lane-packed (th, Wo*Cout) output layout would lift that limit.
    return ho, 1, ho


def _pick_m_chunk(m, cap=1024):
    """Chunk size over M = th*Wo bounding the f32 accumulator's vreg pressure."""
    if m <= cap:
        return m
    for c in (1024, 512, 256, 128):
        if m % c == 0:
            return c
    return m


# ----------------------------------------------------------------------------
# Pallas kernel: merged-tap space-to-depth conv + bias + ReLU, NCHW output
# ----------------------------------------------------------------------------
def _fused_conv_kernel(zb_ref, zh_ref, w_ref, b_ref, o_ref, *, wo, m_chunk):
    # zb_ref: [TH, Wz, KC]    body rows of the space-to-depth tile (Wz = Wo+1)
    # zh_ref: [1,  Wz, KC]    1-row halo (overlapping DMA fetch of the same z)
    # w_ref : [Cout, 4*KC]    merged-tap folded weights (grid-resident)
    # b_ref : [Cout, 1]       bias (grid-resident)
    # o_ref : [Cout, TH*Wo]   NCHW-style output tile, row*col in the lane dim
    th = zb_ref.shape[0]
    kc = zb_ref.shape[2]

    # Hoist weights / bias once per grid step (a handful of vregs).
    w = w_ref[...].astype(jnp.float32)                           # [Cout, 4*KC]
    bias = b_ref[...]                                            # [Cout, 1] f32

    # Upcast streamed (possibly bf16) input once; all VMEM manipulation in f32.
    zb = zb_ref[...].astype(jnp.float32)
    zh = zh_ref[...].astype(jnp.float32)
    z = jnp.concatenate([zb, zh], axis=0)                        # [TH+1, Wz, KC]

    # Merged-tap patch matrix: one K = 16*Cin matmul instead of four K = 4*Cin.
    # Tap order (a,b) = (0,0),(0,1),(1,0),(1,1) matches _fold_weight.
    p = jnp.concatenate(
        [z[0:th, 0:wo, :], z[0:th, 1:wo + 1, :],
         z[1:th + 1, 0:wo, :], z[1:th + 1, 1:wo + 1, :]],
        axis=-1).reshape(th * wo, 4 * kc)                        # [M, 4*KC]

    # One transposed matmul per M-chunk: out[co, m] = sum_k w[co,k] * p[m,k].
    for ci in range(0, th * wo, m_chunk):
        pc = p[ci:ci + m_chunk, :]
        acc = lax.dot_general(
            w, pc, dimension_numbers=(((1,), (1,)), ((), ())),
            preferred_element_type=jnp.float32)                  # [Cout, m_chunk]
        o_ref[:, ci:ci + m_chunk] = jnp.maximum(acc + bias, 0.0).astype(o_ref.dtype)


def _fused_conv(z, w_t, bias_col, *, th, rt, wo, vmem_limit):
    N, Hz, Wz, KC = z.shape
    cout, k4 = w_t.shape
    m = th * wo
    m_chunk = _pick_m_chunk(m)
    kernel = partial(_fused_conv_kernel, wo=wo, m_chunk=m_chunk)

    flops = 2 * N * rt * m * k4 * cout
    bytes_accessed = (z.size * z.dtype.itemsize * (th + 1) // th   # halo re-fetch
                      + w_t.size * w_t.dtype.itemsize
                      + bias_col.size * 4
                      + N * rt * m * cout * 4)

    return pl.pallas_call(
        kernel,
        out_shape=jax.ShapeDtypeStruct((N, cout, rt * m), jnp.float32),
        grid_spec=pltpu.PrefetchScalarGridSpec(
            num_scalar_prefetch=0,
            grid=(N, rt),
            in_specs=[
                # body rows [r*th, (r+1)*th)
                pl.BlockSpec((None, th, Wz, KC), lambda n, r: (n, r, 0, 0)),
                # 1-row halo at element row (r+1)*th (block size 1 -> element idx)
                pl.BlockSpec((None, 1, Wz, KC), lambda n, r: (n, (r + 1) * th, 0, 0)),
                # grid-resident folded weights and bias
                pl.BlockSpec((cout, k4), lambda n, r: (0, 0)),
                pl.BlockSpec((cout, 1), lambda n, r: (0, 0)),
            ],
            out_specs=pl.BlockSpec((None, cout, m), lambda n, r: (n, 0, r)),
        ),
        compiler_params=pltpu.CompilerParams(
            dimension_semantics=("parallel", "parallel"),
            vmem_limit_bytes=vmem_limit,
        ),
        cost_estimate=pl.CostEstimate(flops=flops, transcendentals=0,
                                      bytes_accessed=bytes_accessed),
    )(z, z, w_t, bias_col)


# ----------------------------------------------------------------------------
# Minimal concrete Backbone
# ----------------------------------------------------------------------------
class PallasBackbone:
    """Minimal concrete Backbone: conv3x3(s=2, p=1) + ReLU stem -> {"res2": feat}."""

    def __init__(self, in_channels=4, out_channels=32, *,
                 stream_dtype=jnp.float32, out_tile_bytes=4 << 20, key=None):
        self.in_channels = in_channels
        self.out_channels = out_channels
        self.ksize, self.stride, self.pad = 3, 2, 1
        self.stream_dtype = stream_dtype          # bf16 halves input DMA (v6e/v7x)
        self.out_tile_bytes = out_tile_bytes
        self._out_features = ["res2"]
        self._out_feature_channels = {"res2": out_channels}
        self._out_feature_strides = {"res2": self.stride}
        if key is None:
            key = jax.random.PRNGKey(0)
        kw_, kb_ = jax.random.split(key)
        # deterministic synthetic parameters (PyTorch conv weight layout OIHW)
        self.weight = jax.random.normal(
            kw_, (out_channels, in_channels, 3, 3), dtype=jnp.float32) * 0.1
        self.bias = jax.random.normal(kb_, (out_channels,), dtype=jnp.float32) * 0.1
        # pre-folded kernel parameters (no output-channel padding needed)
        self.w_t = _fold_weight(self.weight, stream_dtype)            # [Cout, 16*Cin]
        self.bias_col = self.bias.reshape(out_channels, 1).astype(jnp.float32)

    @property
    def size_divisibility(self) -> int:
        return self.stride

    def output_shape(self):
        # ShapeSpec-equivalent dicts (channels / stride), per the Backbone contract.
        return {name: {"channels": self._out_feature_channels[name],
                       "stride": self._out_feature_strides[name]}
                for name in self._out_features}

    @partial(jax.jit, static_argnums=0)
    def forward(self, x_nchw):
        N, C, H, W = x_nchw.shape
        assert C == self.in_channels
        Ho, Wo = H // 2, W // 2

        z = _space_to_depth(x_nchw, self.stream_dtype)     # [N, Ho+1, Wo+1, 4C]
        th, rt, ho_pad = _choose_row_tile(Ho, Wo, self.out_channels,
                                          self.out_tile_bytes)
        if ho_pad > Ho:                                    # pad rows so rt*th == ho_pad
            z = jnp.pad(z, ((0, 0), (0, ho_pad - Ho), (0, 0), (0, 0)))

        # VMEM budget: double-buffered z/out tiles + resident weights + patch,
        # capped at 48 MiB so it also fits v7x's 64 MiB physical VMEM.
        itemsize = jnp.dtype(self.stream_dtype).itemsize
        z_tile = (th + 1) * (Wo + 1) * 4 * C * itemsize
        out_tile = self.out_channels * th * Wo * 4
        patch = th * Wo * 16 * C * 4
        step_bytes = 2 * (z_tile + out_tile) + patch + self.w_t.size * itemsize
        vmem_limit = int(min(48 << 20, max(16 << 20, 4 * step_bytes)))

        out_flat = _fused_conv(z, self.w_t, self.bias_col,
                               th=th, rt=rt, wo=Wo, vmem_limit=vmem_limit)
        out = out_flat.reshape(N, self.out_channels, ho_pad, Wo)   # free reshape
        if ho_pad > Ho:
            out = out[:, :, :Ho, :]
        return {"res2": out}                                        # already NCHW

    def __call__(self, x):
        return self.forward(x)


if __name__ == "__main__":
    key = jax.random.PRNGKey(0)
    kx, kp = jax.random.split(key)
    x = jax.random.normal(kx, (2, 4, 16, 16), dtype=jnp.float32)   # NCHW

    # f32 streaming: exact parity with the XLA f32 reference conv.
    backbone = PallasBackbone(in_channels=4, out_channels=32, key=kp)
    feat = jax.block_until_ready(backbone(x)["res2"])

    ref = lax.conv_general_dilated(
        x, backbone.weight, window_strides=(2, 2), padding=((1, 1), (1, 1)),
        dimension_numbers=("NCHW", "OIHW", "NCHW"))
    ref = jnp.maximum(ref + backbone.bias.reshape(1, -1, 1, 1), 0.0)
    assert feat.shape == (2, 32, 8, 8), feat.shape
    assert jnp.allclose(feat, ref, atol=1e-4, rtol=1e-4)

    # bf16 streaming (halves input DMA on v6e/v7x); f32 accumulation in-kernel.
    bb_bf16 = PallasBackbone(in_channels=4, out_channels=32,
                             stream_dtype=jnp.bfloat16, key=kp)
    feat16 = jax.block_until_ready(bb_bf16(x)["res2"])
    assert feat16.shape == (2, 32, 8, 8), feat16.shape
    assert jnp.allclose(feat16, ref, atol=5e-2, rtol=5e-2)

    print("KERNEL_OK")
</pallas_src>

<mosaic_0001>
module attributes {stable_mosaic.version = 11 : i64} {
  func.func @_fused_conv_kernel(%arg0: i32, %arg1: i32, %arg2: memref<1x8x9x16xf32, #tpu.memory_space<vmem>>, %arg3: memref<1x1x9x16xf32, #tpu.memory_space<vmem>>, %arg4: memref<32x64xf32, #tpu.memory_space<vmem>>, %arg5: memref<32x1xf32, #tpu.memory_space<vmem>>, %arg6: memref<1x32x64xf32, #tpu.memory_space<vmem>>) attributes {dimension_semantics = [#tpu.dimension_semantics<parallel>, #tpu.dimension_semantics<parallel>], iteration_bounds = array<i64: 2, 1>, scalar_prefetch = 0 : i64, scratch_operands = 0 : i64, tpu.core_type = #tpu.core_type<tc>, window_params = [{transform_indices = @transform_0, window_bounds = array<i64: 1, 8, 9, 16>}, {transform_indices = @transform_1, window_bounds = array<i64: 1, 1, 9, 16>}, {pipeline_mode = #tpu.pipeline_mode<synchronous>, transform_indices = @transform_2, window_bounds = array<i64: 32, 64>}, {pipeline_mode = #tpu.pipeline_mode<synchronous>, transform_indices = @transform_3, window_bounds = array<i64: 32, 1>}, {transform_indices = @transform_4, window_bounds = array<i64: 1, 32, 64>}]} {
    %c0 = arith.constant 0 : index
    %c0_0 = arith.constant 0 : index
    %0 = vector.load %arg4[%c0, %c0_0] : memref<32x64xf32, #tpu.memory_space<vmem>>, vector<32x64xf32>
    %c0_1 = arith.constant 0 : index
    %c0_2 = arith.constant 0 : index
    %1 = vector.load %arg5[%c0_1, %c0_2] : memref<32x1xf32, #tpu.memory_space<vmem>>, vector<32x1xf32>
    %c0_3 = arith.constant 0 : index
    %c0_4 = arith.constant 0 : index
    %c0_5 = arith.constant 0 : index
    %c0_6 = arith.constant 0 : index
    %2 = vector.load %arg2[%c0_3, %c0_4, %c0_5, %c0_6] : memref<1x8x9x16xf32, #tpu.memory_space<vmem>>, vector<1x8x9x16xf32>
    %3 = vector.shape_cast %2 : vector<1x8x9x16xf32> to vector<8x9x16xf32>
    %c0_7 = arith.constant 0 : index
    %c0_8 = arith.constant 0 : index
    %c0_9 = arith.constant 0 : index
    %c0_10 = arith.constant 0 : index
    %4 = vector.load %arg3[%c0_7, %c0_8, %c0_9, %c0_10] : memref<1x1x9x16xf32, #tpu.memory_space<vmem>>, vector<1x1x9x16xf32>
    %5 = vector.shape_cast %4 : vector<1x1x9x16xf32> to vector<1x9x16xf32>
    %6 = tpu.concatenate %3, %5 in 0 : vector<8x9x16xf32>, vector<1x9x16xf32> -> vector<9x9x16xf32>
    %7 = vector.extract_strided_slice %6 {offsets = [0, 0, 0], sizes = [8, 8, 16], strides = [1, 1, 1]} : vector<9x9x16xf32> to vector<8x8x16xf32>
    %8 = vector.extract_strided_slice %6 {offsets = [0, 1, 0], sizes = [8, 8, 16], strides = [1, 1, 1]} : vector<9x9x16xf32> to vector<8x8x16xf32>
    %9 = vector.extract_strided_slice %6 {offsets = [1, 0, 0], sizes = [8, 8, 16], strides = [1, 1, 1]} : vector<9x9x16xf32> to vector<8x8x16xf32>
    %10 = vector.extract_strided_slice %6 {offsets = [1, 1, 0], sizes = [8, 8, 16], strides = [1, 1, 1]} : vector<9x9x16xf32> to vector<8x8x16xf32>
    %11 = tpu.concatenate %7, %8, %9, %10 in 2 : vector<8x8x16xf32>, vector<8x8x16xf32>, vector<8x8x16xf32>, vector<8x8x16xf32> -> vector<8x8x64xf32>
    %12 = vector.shape_cast %11 : vector<8x8x64xf32> to vector<64x64xf32>
    %cst = arith.constant dense<0.000000e+00> : vector<32x64xf32>
    %13 = tpu.matmul %0, %12, %cst {dimension_numbers = #tpu.dot_dimension_numbers<[1], [1], [0], [0], [0, 0, 1, 0], [], []>} : vector<32x64xf32>, vector<64x64xf32>, vector<32x64xf32> -> vector<32x64xf32>
    %14 = vector.broadcast %1 : vector<32x1xf32> to vector<32x64xf32>
    %15 = arith.addf %13, %14 : vector<32x64xf32>
    %cst_11 = arith.constant 0.000000e+00 : f32
    %16 = vector.broadcast %cst_11 : f32 to vector<32x64xf32>
    %17 = arith.maximumf %15, %16 : vector<32x64xf32>
    %c0_12 = arith.constant 0 : index
    %c0_13 = arith.constant 0 : index
    %c0_14 = arith.constant 0 : index
    %18 = vector.load %arg6[%c0_12, %c0_13, %c0_14] : memref<1x32x64xf32, #tpu.memory_space<vmem>>, vector<1x32x64xf32>
    %19 = vector.shape_cast %18 : vector<1x32x64xf32> to vector<32x64xf32>
    %20 = vector.shape_cast %17 : vector<32x64xf32> to vector<1x32x64xf32>
    tpu.vector_store %arg6[%c0_12, %c0_13, %c0_14], %20 {strides = array<i32>} : memref<1x32x64xf32, #tpu.memory_space<vmem>>, vector<1x32x64xf32>,
    return
  }
  func.func @transform_0(%arg0: i32, %arg1: i32) -> (i32, i32, i32, i32) {
    %c0_i32 = arith.constant 0 : i32
    %c0_i32_0 = arith.constant 0 : i32
    %c0_i32_1 = arith.constant 0 : i32
    return %arg0, %arg1, %c0_i32, %c0_i32_0 : i32, i32, i32, i32
  }
  func.func @transform_1(%arg0: i32, %arg1: i32) -> (i32, i32, i32, i32) {
    %c1_i32 = arith.constant 1 : i32
    %0 = arith.addi %arg1, %c1_i32 : i32
    %c8_i32 = arith.constant 8 : i32
    %1 = arith.muli %0, %c8_i32 : i32
    %c0_i32 = arith.constant 0 : i32
    %c0_i32_0 = arith.constant 0 : i32
    %c0_i32_1 = arith.constant 0 : i32
    return %arg0, %1, %c0_i32, %c0_i32_0 : i32, i32, i32, i32
  }
  func.func @transform_2(%arg0: i32, %arg1: i32) -> (i32, i32) {
    %c0_i32 = arith.constant 0 : i32
    %c0_i32_0 = arith.constant 0 : i32
    %c0_i32_1 = arith.constant 0 : i32
    return %c0_i32, %c0_i32_0 : i32, i32
  }
  func.func @transform_3(%arg0: i32, %arg1: i32) -> (i32, i32) {
    %c0_i32 = arith.constant 0 : i32
    %c0_i32_0 = arith.constant 0 : i32
    %c0_i32_1 = arith.constant 0 : i32
    return %c0_i32, %c0_i32_0 : i32, i32
  }
  func.func @transform_4(%arg0: i32, %arg1: i32) -> (i32, i32, i32) {
    %c0_i32 = arith.constant 0 : i32
    %c0_i32_0 = arith.constant 0 : i32
    return %arg0, %c0_i32, %arg1 : i32, i32, i32
  }
}

</mosaic_0001>

<llo_original>
// kernel: forward.1
$region0: #{forward.1}
  #allocation0 [shape = 'u32[]', space=smem, size = 0x4, offset = 0x4, fixed_abs, tag = 'smem constant byte address 0x4 - core index']
  #allocation1 [shape = 'u32[72,128]{1,0:T(1,128)}', space=vmem, size = 0x9000, scoped, tag = 'internal scratch']
  %s0 = inlined_call_operand.vmem [shape: f32[2,9,9,16], index: 0, kind: input, shape index: {}, may-alias: {0,1}]
  %s1 = inlined_call_operand.vmem [shape: f32[2,9,9,16], index: 1, kind: input, shape index: {}, may-alias: {0,1}]
  %s2 = inlined_call_operand.vmem [shape: f32[32,64], index: 2, kind: input, shape index: {}]
  %s3 = inlined_call_operand.vmem [shape: f32[32,1], index: 3, kind: input, shape index: {}]
  %s4 = inlined_call_operand.vmem [shape: f32[2,32,64], index: 4, kind: output, shape index: {}]
  %s5 = sld [smem:[#allocation0]]
  $region49: #{forward.1} parent=0
    _
  %s7 = ssub.s32 1, %s5
  %s8 = scalar_select 0, %s7, %s5
  loop: start=0, step=1, limit=4
  $region2: #{forward.1} parent=0 // loop_pre_header
    _
  $region3: #{forward.1} parent=0 // loop_header
    %s10 = sphi 0, %s14
    %p11 = scmp.ge.s32.totalorder %s10, 4
    %s17 = sphi 0, %s29
    %s18 = sphi 0, %s25
    %s19 = sphi 0, %s17
    %s20 = sphi 0, %s18
    %s21 = sphi 0, %s19
    %s22 = sphi 0, %s20
    %s34 = sphi 0, %s36
    %s37 = sphi 0, %s34
    %s38 = sphi 0, %s37
    %s54 = sphi 0, %s38
    %s66 = sphi 0, %s68
    %s69 = sphi 0, %s66
    %s70 = sphi 0, %s69
    %s86 = sphi 0, %s70
    %s90 = sphi 0, %s90
    %s92 = sphi 0, %s90
    %s93 = sphi 0, %s92
    %s107 = sphi 0, %s93
    %s111 = sphi 0, %s111
    %s113 = sphi 0, %s111
    %s114 = sphi 0, %s113
    %s128 = sphi 0, %s114
    %s136 = sphi 0, %s138
    %s139 = sphi 0, %s136
    %s140 = sphi 0, %s139
    %s156 = sphi 0, %s140
  $region4: #{forward.1} parent=0 // loop_header_branch
    %13 = sbr.rel (%p11) target = $region8
  $region5: #{forward.1} parent=0 // loop_body
    %s15 = ssub.s32 %s10, 1
    %s16 = ssub.s32 %s10, 2
    %s23 = sadd.s32 1, %s18
    %p24 = scmp.ge.s32.totalorder %s23, 1
    %s25 = scalar_select %p24, 0, %s23
    %s26 = sadd.s32 1, %s17
    %s27 = scalar_select %p24, %s26, %s17
    %p28 = scmp.ge.s32.totalorder %s27, 2
    %s29 = scalar_select %p28, 0, %s27
    %s30 = ssub.s32 %s17, %s29
    %s31 = ssub.s32 %s18, %s25
    %s32 = sor.u32 %s30, %s31
    %p33 = scmp.eq.s32.totalorder %s32, 0
    %s35 = sadd.s32 %s34, 1
    %s36 = scalar_select %p33, %s34, %s35
    %p39 = pneg %p33
    %p40 = scmp.eq.s32.totalorder %s10, 1
    %p41 = por %p39, %p40
    %p42 = scmp.ne.s32.totalorder %s34, %s37
    %p43 = scmp.eq.s32.totalorder %s10, 0
    %p44 = por %p42, %p43
    %p45 = scmp.ne.s32.totalorder %s34, %s37
    %p46 = scmp.eq.s32.totalorder %s15, 1
    %p47 = por %p45, %p46
    %p48 = scmp.ne.s32.totalorder %s37, %s38
    %p49 = scmp.eq.s32.totalorder %s15, 0
    %p50 = por %p48, %p49
    %p51 = scmp.ne.s32.totalorder %s37, %s38
    %p52 = scmp.eq.s32.totalorder %s16, 1
    %p53 = por %p51, %p52
    %p55 = scmp.ne.s32.totalorder %s38, %s54
    %p56 = scmp.eq.s32.totalorder %s16, 0
    %p57 = por %p55, %p56
    %s58 = sadd.s32 %s18, 1
    %s59 = smul.u32 %s58, 8
    %s60 = sadd.s32 %s25, 1
    %s61 = smul.u32 %s60, 8
    %s62 = ssub.s32 %s17, %s29
    %s63 = ssub.s32 %s59, %s61
    %s64 = sor.u32 %s62, %s63
    %p65 = scmp.eq.s32.totalorder %s64, 0
    %s67 = sadd.s32 %s66, 1
    %s68 = scalar_select %p65, %s66, %s67
    %p71 = pneg %p65
    %p72 = scmp.eq.s32.totalorder %s10, 1
    %p73 = por %p71, %p72
    %p74 = scmp.ne.s32.totalorder %s66, %s69
    %p75 = scmp.eq.s32.totalorder %s10, 0
    %p76 = por %p74, %p75
    %p77 = scmp.ne.s32.totalorder %s66, %s69
    %p78 = scmp.eq.s32.totalorder %s15, 1
    %p79 = por %p77, %p78
    %p80 = scmp.ne.s32.totalorder %s69, %s70
    %p81 = scmp.eq.s32.totalorder %s15, 0
    %p82 = por %p80, %p81
    %p83 = scmp.ne.s32.totalorder %s69, %s70
    %p84 = scmp.eq.s32.totalorder %s16, 1
    %p85 = por %p83, %p84
    %p87 = scmp.ne.s32.totalorder %s70, %s86
    %p88 = scmp.eq.s32.totalorder %s16, 0
    %p89 = por %p87, %p88
    %s91 = sadd.s32 %s90, 1
    %p94 = scmp.eq.s32.totalorder %s10, 1
    %p95 = scmp.ne.s32.totalorder %s90, %s92
    %p96 = scmp.eq.s32.totalorder %s10, 0
    %p97 = por %p95, %p96
    %p98 = scmp.ne.s32.totalorder %s90, %s92
    %p99 = scmp.eq.s32.totalorder %s15, 1
    %p100 = por %p98, %p99
    %p101 = scmp.ne.s32.totalorder %s92, %s93
    %p102 = scmp.eq.s32.totalorder %s15, 0
    %p103 = por %p101, %p102
    %p104 = scmp.ne.s32.totalorder %s92, %s93
    %p105 = scmp.eq.s32.totalorder %s16, 1
    %p106 = por %p104, %p105
    %p108 = scmp.ne.s32.totalorder %s93, %s107
    %p109 = scmp.eq.s32.totalorder %s16, 0
    %p110 = por %p108, %p109
    %s112 = sadd.s32 %s111, 1
    %p115 = scmp.eq.s32.totalorder %s10, 1
    %p116 = scmp.ne.s32.totalorder %s111, %s113
    %p117 = scmp.eq.s32.totalorder %s10, 0
    %p118 = por %p116, %p117
    %p119 = scmp.ne.s32.totalorder %s111, %s113
    %p120 = scmp.eq.s32.totalorder %s15, 1
    %p121 = por %p119, %p120
    %p122 = scmp.ne.s32.totalorder %s113, %s114
    %p123 = scmp.eq.s32.totalorder %s15, 0
    %p124 = por %p122, %p123
    %p125 = scmp.ne.s32.totalorder %s113, %s114
    %p126 = scmp.eq.s32.totalorder %s16, 1
    %p127 = por %p125, %p126
    %p129 = scmp.ne.s32.totalorder %s114, %s128
    %p130 = scmp.eq.s32.totalorder %s16, 0
    %p131 = por %p129, %p130
    %s132 = ssub.s32 %s17, %s29
    %s133 = ssub.s32 %s18, %s25
    %s134 = sor.u32 %s132, %s133
    %p135 = scmp.eq.s32.totalorder %s134, 0
    %s137 = sadd.s32 %s136, 1
    %s138 = scalar_select %p135, %s136, %s137
    %p141 = pneg %p135
    %p142 = scmp.eq.s32.totalorder %s10, 1
    %p143 = por %p141, %p142
    %p144 = scmp.ne.s32.totalorder %s136, %s139
    %p145 = scmp.eq.s32.totalorder %s10, 0
    %p146 = por %p144, %p145
    %p147 = scmp.ne.s32.totalorder %s136, %s139
    %p148 = scmp.eq.s32.totalorder %s15, 1
    %p149 = por %p147, %p148
    %p150 = scmp.ne.s32.totalorder %s139, %s140
    %p151 = scmp.eq.s32.totalorder %s15, 0
    %p152 = por %p150, %p151
    %p153 = scmp.ne.s32.totalorder %s139, %s140
    %p154 = scmp.eq.s32.totalorder %s16, 1
    %p155 = por %p153, %p154
    %p157 = scmp.ne.s32.totalorder %s140, %s156
    %p158 = scmp.eq.s32.totalorder %s16, 0
    %p159 = por %p157, %p158
    %p160 = scmp.le.s32.totalorder 1, %s10
    %p161 = scmp.lt.s32.totalorder %s10, 3
    %p162 = pnand %p160, %p161
    %p163 = pneg %p162
    // Predicated region
    $region9: #{forward.1} parent=5 // pred_check
      _
    $region10: #{forward.1} parent=5 // pred_check_branch
      %165 = sbr.rel (%p162) target = $region12
    $region11: #{forward.1} parent=5 // pred_region
      %s166 = ssub.s32 %s10, 1
      // Predicated region
      $region13: #{forward.1} parent=11 // pred_check
        %p167 = pneg %p103
      $region14: #{forward.1} parent=11 // pred_check_branch
        %169 = sbr.rel (%p167) target = $region16
      $region15: #{forward.1} parent=11 // pred_region
        _
      $region16: #{forward.1} parent=11 // pred_fallthru
        _
      // Predicated region
      $region17: #{forward.1} parent=11 // pred_check
        %p170 = pneg %p124
      $region18: #{forward.1} parent=11 // pred_check_branch
        %172 = sbr.rel (%p170) target = $region20
      $region19: #{forward.1} parent=11 // pred_region
        _
      $region20: #{forward.1} parent=11 // pred_fallthru
        _
    $region12: #{forward.1} parent=5 // pred_fallthru
      _
    %p173 = scmp.lt.s32.totalorder %s10, 2
    // Predicated region
    $region21: #{forward.1} parent=5 // pred_check
      %p174 = pneg %p173
    $region22: #{forward.1} parent=5 // pred_check_branch
      %176 = sbr.rel (%p174) target = $region24
    $region23: #{forward.1} parent=5 // pred_region
      // Predicated region
      $region25: #{forward.1} parent=23 // pred_check
        %p177 = pneg %p44
      $region26: #{forward.1} parent=23 // pred_check_branch
        %179 = sbr.rel (%p177) target = $region28
      $region27: #{forward.1} parent=23 // pred_region
        %s180 = smul.u32 8, %s18
        %s181 = ssub.s32 9, %s180
        %p182 = scmp.lt.s32.totalorder %s181, 8
        %s183 = scalar_select %p182, %s181, 8
        %s184 = smul.u32 8, %s183
        %s185 = smul.u32 %s184, 2
        %p186 = scmp.lt.s32.totalorder %s17, 1
        %s187 = scalar_select %p186, %s17, 1
        %p188 = scmp.lt.s32.totalorder %s180, 8
        %s189 = scalar_select %p188, %s180, 8
        %s190 = smul.addr %s189, 2
        %s191 = smul.addr %s187, 18
        %s192 = sadd.s32 %s190, %s191
        %s193 = smul.addr %s192, 8
        %s194 = scalar_lea.vmem %s0, %s193
        %s195 = smul.u32 8, %s18
        %s196 = ssub.s32 9, %s195
        %p197 = scmp.lt.s32.totalorder %s196, 8
        %s198 = scalar_select %p197, %s196, 8
        %s199 = smul.u32 8, %s198
        %s200 = smul.u32 %s199, 2
      $region28: #{forward.1} parent=23 // pred_fallthru
        _
      // Predicated region
      $region29: #{forward.1} parent=23 // pred_check
        %p201 = pneg %p76
      $region30: #{forward.1} parent=23 // pred_check_branch
        %203 = sbr.rel (%p201) target = $region32
      $region31: #{forward.1} parent=23 // pred_region
        %s204 = sadd.s32 %s18, 1
        %s205 = smul.u32 %s204, 8
        %p206 = scmp.lt.s32.totalorder %s17, 1
        %s207 = scalar_select %p206, %s17, 1
        %p208 = scmp.lt.s32.totalorder %s205, 8
        %s209 = scalar_select %p208, %s205, 8
        %s210 = smul.addr %s209, 2
        %s211 = smul.addr %s207, 18
        %s212 = sadd.s32 %s210, %s211
        %s213 = smul.addr %s212, 8
        %s214 = scalar_lea.vmem %s1, %s213
        %s215 = sadd.s32 %s18, 1
        %s216 = smul.u32 %s215, 8
      $region32: #{forward.1} parent=23 // pred_fallthru
        _
    $region24: #{forward.1} parent=5 // pred_fallthru
      _
    %p217 = scmp.le.s32.totalorder 1, %s10
    %p218 = scmp.lt.s32.totalorder %s10, 3
    %p219 = pnand %p217, %p218
    %p220 = pneg %p219
    // Predicated region
    $region33: #{forward.1} parent=5 // pred_check
      _
    $region34: #{forward.1} parent=5 // pred_check_branch
      %222 = sbr.rel (%p219) target = $region36
    $region35: #{forward.1} parent=5 // pred_region
      %s223 = ssub.s32 %s10, 1
      %s224 = smul.u32 8, %s20
      %s225 = ssub.s32 9, %s224
      %p226 = scmp.lt.s32.totalorder %s225, 8
      %s227 = scalar_select %p226, %s225, 8
      %s228 = smul.u32 8, %s227
      %s229 = smul.u32 %s228, 2
      %p230 = scmp.lt.s32.totalorder %s19, 1
      %s231 = scalar_select %p230, %s19, 1
      %p232 = scmp.lt.s32.totalorder %s224, 8
      %s233 = scalar_select %p232, %s224, 8
      %s234 = smul.addr %s233, 2
      %s235 = smul.addr %s231, 18
      %s236 = sadd.s32 %s234, %s235
      %s237 = smul.addr %s236, 8
      %s238 = scalar_lea.vmem %s0, %s237
      %p239 = pneg %p50
      %p240 = pneg %p47
      %s241 = sadd.s32 %s20, 1
      %s242 = smul.u32 %s241, 8
      %p243 = scmp.lt.s32.totalorder %s19, 1
      %s244 = scalar_select %p243, %s19, 1
      %p245 = scmp.lt.s32.totalorder %s242, 8
      %s246 = scalar_select %p245, %s242, 8
      %s247 = smul.addr %s246, 2
      %s248 = smul.addr %s244, 18
      %s249 = sadd.s32 %s247, %s248
      %s250 = smul.addr %s249, 8
      %s251 = scalar_lea.vmem %s1, %s250
      %p252 = pneg %p82
      %p253 = pneg %p79
      %p254 = pneg %p103
      %p255 = pneg %p100
      %p256 = pneg %p124
      %p257 = pneg %p121
      %p258 = pneg %p152
      %p259 = pneg %p149
      %p260 = scmp.lt.s32.totalorder %s19, 1
      %s261 = scalar_select %p260, %s19, 1
      %p262 = scmp.lt.s32.totalorder %s20, 0
      %s263 = scalar_select %p262, %s20, 0
      %s264 = smul.addr %s261, 4
      %s265 = sadd.s32 %s263, %s264
      %s266 = smul.addr %s265, 8
      %s267 = scalar_lea.vmem %s4, %s266
      %s268 = smul.u32 8, %s20
      %s269 = ssub.s32 9, %s268
      %p270 = scmp.lt.s32.totalorder %s269, 8
      %s271 = scalar_select %p270, %s269, 8
      %s272 = smul.u32 8, %s271
      %s273 = smul.u32 %s272, 2
      %p274 = scmp.lt.s32.totalorder %s19, 1
      %s275 = scalar_select %p274, %s19, 1
      %p276 = scmp.lt.s32.totalorder %s268, 8
      %s277 = scalar_select %p276, %s268, 8
      %s278 = smul.addr %s277, 2
      %s279 = smul.addr %s275, 18
      %s280 = sadd.s32 %s278, %s279
      %s281 = smul.addr %s280, 8
      %s282 = scalar_lea.vmem %s0, %s281
      %s283 = smul.u32 8, %s20
      %s284 = ssub.s32 9, %s283
      %p285 = scmp.lt.s32.totalorder %s284, 8
      %s286 = scalar_select %p285, %s284, 8
      %s287 = smul.u32 8, %s286
      %s288 = smul.u32 %s287, 2
      %s289 = sadd.s32 %s20, 1
      %s290 = smul.u32 %s289, 8
      %p291 = scmp.lt.s32.totalorder %s19, 1
      %s292 = scalar_select %p291, %s19, 1
      %p293 = scmp.lt.s32.totalorder %s290, 8
      %s294 = scalar_select %p293, %s290, 8
      %s295 = smul.addr %s294, 2
      %s296 = smul.addr %s292, 18
      %s297 = sadd.s32 %s295, %s296
      %s298 = smul.addr %s297, 8
      %s299 = scalar_lea.vmem %s1, %s298
      %s300 = sadd.s32 %s20, 1
      %s301 = smul.u32 %s300, 8
      %p302 = scmp.lt.s32.totalorder %s19, 1
      %s303 = scalar_select %p302, %s19, 1
      %p304 = scmp.lt.s32.totalorder %s20, 0
      %s305 = scalar_select %p304, %s20, 0
      %s306 = smul.addr %s303, 4
      %s307 = sadd.s32 %s305, %s306
      %s308 = smul.addr %s307, 8
      %s309 = scalar_lea.vmem %s4, %s308
      %v310 = vld [vmem:[%s2] sm:$0xff]
      %v311 = vld [vmem:[%s2 + $0x8] sm:$0xff]
      %v312 = vld [vmem:[%s2 + $0x10] sm:$0xff]
      %v313 = vld [vmem:[%s2 + $0x18] sm:$0xff]
      %v314 = vld [vmem:[%s3] sm:$0xff]
      %v315 = vld [vmem:[%s3 + $0x8] sm:$0xff]
      %v316 = vld [vmem:[%s3 + $0x10] sm:$0xff]
      %v317 = vld [vmem:[%s3 + $0x18] sm:$0xff]
      %v318 = vld [vmem:[%s282] sm:$0xff]
      %v319 = vld [vmem:[%s282 + $0x8] sm:$0x1]
      %v320 = vld [vmem:[%s282 + $0x10] sm:$0xff]
      %v321 = vld [vmem:[%s282 + $0x18] sm:$0x1]
      %v322 = vld [vmem:[%s282 + $0x20] sm:$0xff]
      %v323 = vld [vmem:[%s282 + $0x28] sm:$0x1]
      %v324 = vld [vmem:[%s282 + $0x30] sm:$0xff]
      %v325 = vld [vmem:[%s282 + $0x38] sm:$0x1]
      %v326 = vld [vmem:[%s282 + $0x40] sm:$0xff]
      %v327 = vld [vmem:[%s282 + $0x48] sm:$0x1]
      %v328 = vld [vmem:[%s282 + $0x50] sm:$0xff]
      %v329 = vld [vmem:[%s282 + $0x58] sm:$0x1]
      %v330 = vld [vmem:[%s282 + $0x60] sm:$0xff]
      %v331 = vld [vmem:[%s282 + $0x68] sm:$0x1]
      %v332 = vld [vmem:[%s282 + $0x70] sm:$0xff]
      %v333 = vld [vmem:[%s282 + $0x78] sm:$0x1]
      %v334 = vld [vmem:[%s299] sm:$0xff]
      %v335 = vld [vmem:[%s299 + $0x8] sm:$0x1]
      %vm352 = vcmask 1046528
      %v353 = vrot.slane %v318, 1
      %v354 = vrot.slane %v319, 1
      %v355 = vsel %vm352, %v353, %v354
      %v356 = vrot.slane %v320, 1
      %v357 = vrot.slane %v321, 1
      %v358 = vsel %vm352, %v356, %v357
      %v359 = vrot.slane %v322, 1
      %v360 = vrot.slane %v323, 1
      %v361 = vsel %vm352, %v359, %v360
      %v362 = vrot.slane %v324, 1
      %v363 = vrot.slane %v325, 1
      %v364 = vsel %vm352, %v362, %v363
      %v365 = vrot.slane %v326, 1
      %v366 = vrot.slane %v327, 1
      %v367 = vsel %vm352, %v365, %v366
      %v368 = vrot.slane %v328, 1
      %v369 = vrot.slane %v329, 1
      %v370 = vsel %vm352, %v368, %v369
      %v371 = vrot.slane %v330, 1
      %v372 = vrot.slane %v331, 1
      %v373 = vsel %vm352, %v371, %v372
      %v374 = vrot.slane %v332, 1
      %v375 = vrot.slane %v333, 1
      %v376 = vsel %vm352, %v374, %v375
      %377 = vrot.lane.b32.xlu0 %v355, 16
      %v378 = vpop.permute.xlu0 %377
      %379 = vrot.lane.b32.xlu0 %v358, 16
      %v380 = vpop.permute.xlu0 %379
      %381 = vrot.lane.b32.xlu0 %v361, 16
      %v382 = vpop.permute.xlu0 %381
      %383 = vrot.lane.b32.xlu0 %v364, 16
      %v384 = vpop.permute.xlu0 %383
      %385 = vrot.lane.b32.xlu0 %v367, 16
      %v386 = vpop.permute.xlu0 %385
      %387 = vrot.lane.b32.xlu0 %v370, 16
      %v388 = vpop.permute.xlu0 %387
      %389 = vrot.lane.b32.xlu0 %v373, 16
      %v390 = vpop.permute.xlu0 %389
      %391 = vrot.lane.b32.xlu0 %v376, 16
      %v392 = vpop.permute.xlu0 %391
      %402 = vrot.lane.b32.xlu0 %v320, 32
      %v403 = vpop.permute.xlu0 %402
      %404 = vrot.lane.b32.xlu0 %v322, 32
      %v405 = vpop.permute.xlu0 %404
      %406 = vrot.lane.b32.xlu0 %v324, 32
      %v407 = vpop.permute.xlu0 %406
      %408 = vrot.lane.b32.xlu0 %v326, 32
      %v409 = vpop.permute.xlu0 %408
      %410 = vrot.lane.b32.xlu0 %v328, 32
      %v411 = vpop.permute.xlu0 %410
      %412 = vrot.lane.b32.xlu0 %v330, 32
      %v413 = vpop.permute.xlu0 %412
      %414 = vrot.lane.b32.xlu0 %v332, 32
      %v415 = vpop.permute.xlu0 %414
      %416 = vrot.lane.b32.xlu0 %v334, 32
      %v417 = vpop.permute.xlu0 %416
      %v427 = vrot.slane %v334, 1
      %v428 = vrot.slane %v335, 1
      %v429 = vsel %vm352, %v427, %v428
      %430 = vrot.lane.b32.xlu0 %v358, 48
      %v431 = vpop.permute.xlu0 %430
      %432 = vrot.lane.b32.xlu0 %v361, 48
      %v433 = vpop.permute.xlu0 %432
      %434 = vrot.lane.b32.xlu0 %v364, 48
      %v435 = vpop.permute.xlu0 %434
      %436 = vrot.lane.b32.xlu0 %v367, 48
      %v437 = vpop.permute.xlu0 %436
      %438 = vrot.lane.b32.xlu0 %v370, 48
      %v439 = vpop.permute.xlu0 %438
      %440 = vrot.lane.b32.xlu0 %v373, 48
      %v441 = vpop.permute.xlu0 %440
      %442 = vrot.lane.b32.xlu0 %v376, 48
      %v443 = vpop.permute.xlu0 %442
      %444 = vrot.lane.b32.xlu0 %v429, 48
      %v445 = vpop.permute.xlu0 %444
      %vm454 = vcmask 130048
      %v455 = vsel %vm454, %v318, %v378
      %v456 = vsel %vm454, %v320, %v380
      %v457 = vsel %vm454, %v322, %v382
      %v458 = vsel %vm454, %v324, %v384
      %v459 = vsel %vm454, %v326, %v386
      %v460 = vsel %vm454, %v328, %v388
      %v461 = vsel %vm454, %v330, %v390
      %v462 = vsel %vm454, %v332, %v392
      %vm463 = vcmask 261120
      %v464 = vsel %vm463, %v455, %v403
      %v465 = vsel %vm463, %v456, %v405
      %v466 = vsel %vm463, %v457, %v407
      %v467 = vsel %vm463, %v458, %v409
      %v468 = vsel %vm463, %v459, %v411
      %v469 = vsel %vm463, %v460, %v413
      %v470 = vsel %vm463, %v461, %v415
      %v471 = vsel %vm463, %v462, %v417
      %vm472 = vcmask 392192
      %v473 = vsel %vm472, %v464, %v431
      %v474 = vsel %vm472, %v465, %v433
      %v475 = vsel %vm472, %v466, %v435
      %v476 = vsel %vm472, %v467, %v437
      %v477 = vsel %vm472, %v468, %v439
      %v478 = vsel %vm472, %v469, %v441
      %v479 = vsel %vm472, %v470, %v443
      %v480 = vsel %vm472, %v471, %v445
      %482 = vset.pattern.permute.xlu0 0
      %483 = vperm.xlu0 %482, %v314
      %v484 = vpop.permute.xlu0 %483
      %487 = vset.pattern.permute.xlu0 0
      %488 = vperm.xlu0 %487, %v315
      %v489 = vpop.permute.xlu0 %488
      %492 = vset.pattern.permute.xlu0 0
      %493 = vperm.xlu0 %492, %v316
      %v494 = vpop.permute.xlu0 %493
      %497 = vset.pattern.permute.xlu0 0
      %498 = vperm.xlu0 %497, %v317
      %v499 = vpop.permute.xlu0 %498
      %vm501 = vcmask 523264
      %v503 = vsel %vm501, %v310, 0
      %v506 = vsel %vm501, %v311, 0
      %v509 = vsel %vm501, %v312, 0
      %v512 = vsel %vm501, %v313, 0
      %v515 = vsel %vm501, %v473, 0
      %v518 = vsel %vm501, %v474, 0
      %v521 = vsel %vm501, %v475, 0
      %v524 = vsel %vm501, %v476, 0
      %v527 = vsel %vm501, %v477, 0
      %v530 = vsel %vm501, %v478, 0
      %v533 = vsel %vm501, %v479, 0
      %v536 = vsel %vm501, %v480, 0
      %538 = vmatpush.xpose.msra.mxu0 0.0
      %539 = vmatpush.xpose.msra.mxu0 0.0
      %540 = vmatpush.xpose.msra.mxu0 0.0
      %541 = vmatpush.xpose.msra.mxu0 0.0
      %542 = vmatpush.xpose.msra.mxu0 0.0
      %543 = vmatpush.xpose.msra.mxu0 0.0
      %544 = vmatpush.xpose.msra.mxu0 0.0
      %545 = vmatpush.xpose.msra.mxu0 0.0
      %546 = vmatpush.xpose.msra.mxu0 %v536
      %547 = vmatpush.xpose.msra.mxu0 %v533
      %548 = vmatpush.xpose.msra.mxu0 %v530
      %549 = vmatpush.xpose.msra.mxu0 %v527
      %550 = vmatpush.xpose.msra.mxu0 %v524
      %551 = vmatpush.xpose.msra.mxu0 %v521
      %552 = vmatpush.xpose.msra.mxu0 %v518
      %553 = vmatpush.xpose.msra.mxu0 %v515
      %554 = vmatmul.f32.gmra.mxu0 %v503
      %v555 = vpop.f32.mrf.mxu0
      %v556 = vadd.f32 %v484, %v555
      %557 = vmatmul.f32.gmra.mxu0 %v506
      %v558 = vpop.f32.mrf.mxu0
      %v559 = vadd.f32 %v489, %v558
      %560 = vmatmul.f32.gmra.mxu0 %v509
      %v561 = vpop.f32.mrf.mxu0
      %v562 = vadd.f32 %v494, %v561
      %563 = vmatmul.f32.gmra.mxu0 %v512
      %v564 = vpop.f32.mrf.mxu0
      %v565 = vadd.f32 %v499, %v564
      %566 = vdwg.mxu0
      %v567 = vmax.f32 %v556, 0.0
      %v568 = vmax.f32 %v559, 0.0
      %v569 = vmax.f32 %v562, 0.0
      %v570 = vmax.f32 %v565, 0.0
      %571 = vst.msk [vmem:[%s309] sm:$0xff] %vm501, %v567
      %572 = vst.msk [vmem:[%s309 + $0x8] sm:$0xff] %vm501, %v568
      %573 = vst.msk [vmem:[%s309 + $0x10] sm:$0xff] %vm501, %v569
      %574 = vst.msk [vmem:[%s309 + $0x18] sm:$0xff] %vm501, %v570
      %p575 = scmp.lt.s32.totalorder %s19, 1
      %s576 = scalar_select %p575, %s19, 1
      %p577 = scmp.lt.s32.totalorder %s20, 0
      %s578 = scalar_select %p577, %s20, 0
      %s579 = smul.addr %s576, 4
      %s580 = sadd.s32 %s578, %s579
      %s581 = smul.addr %s580, 8
      %s582 = scalar_lea.vmem %s4, %s581
      // Predicated region
      $region37: #{forward.1} parent=35 // pred_check
        %p583 = pneg %p149
      $region38: #{forward.1} parent=35 // pred_check_branch
        %585 = sbr.rel (%p583) target = $region40
      $region39: #{forward.1} parent=35 // pred_region
        _
      $region40: #{forward.1} parent=35 // pred_fallthru
        _
    $region36: #{forward.1} parent=5 // pred_fallthru
      _
    %p586 = scmp.le.s32.totalorder 2, %s10
    // Predicated region
    $region41: #{forward.1} parent=5 // pred_check
      %p587 = pneg %p586
    $region42: #{forward.1} parent=5 // pred_check_branch
      %589 = sbr.rel (%p587) target = $region44
    $region43: #{forward.1} parent=5 // pred_region
      %s590 = ssub.s32 %s10, 2
      // Predicated region
      $region45: #{forward.1} parent=43 // pred_check
        %p591 = pneg %p155
      $region46: #{forward.1} parent=43 // pred_check_branch
        %593 = sbr.rel (%p591) target = $region48
      $region47: #{forward.1} parent=43 // pred_region
        %p594 = scmp.lt.s32.totalorder %s21, 1
        %s595 = scalar_select %p594, %s21, 1
        %p596 = scmp.lt.s32.totalorder %s22, 0
        %s597 = scalar_select %p596, %s22, 0
        %s598 = smul.addr %s595, 4
        %s599 = sadd.s32 %s597, %s598
        %s600 = smul.addr %s599, 8
        %s601 = scalar_lea.vmem %s4, %s600
      $region48: #{forward.1} parent=43 // pred_fallthru
        _
    $region44: #{forward.1} parent=5 // pred_fallthru
      _
  $region6: #{forward.1} parent=0 // loop_footer
    %s14 = sadd.s32 1, %s10
  $region7: #{forward.1} parent=0 // loop_footer_branch
    %9 = sbr.rel target = $region3
  $region8: #{forward.1} parent=0 // loop_exit
    _

</llo_original>
